<compile_context>
chip_gen: v7x
topology: tpu7x:2x2x1
jax: 0.10.0
libtpu: 0.0.40
codegen_flags: <defaults>
</compile_context>

<pallas_src>
import numpy as np
import jax
import jax.numpy as jnp
from jax.experimental import pallas as pl
from jax.experimental.pallas import tpu as pltpu


def _round_up(x, m):
    return ((x + m - 1) // m) * m


# ---------------------------------------------------------------------------
# Kernel 1: spatial consistency check, tiled over (batch, row-tile, col-tile)
#   d_src[i,j] = ||src_i - src_j||, d_tgt likewise,
#   compat     = clamp(1 - (d_src - d_tgt)^2 * inv_sigma2, min=0)
# ---------------------------------------------------------------------------
def _compat_kernel(row_ref, colT_ref, out_ref, *, inv_sigma2):
    rows = row_ref[...]          # (TI, 6)  row positions
    colsT = colT_ref[...]        # (6, TJ)  column positions, lane-dense

    src_i = rows[:, 0:3]         # (TI, 3)
    tgt_i = rows[:, 3:6]
    src_jT = colsT[0:3, :]       # (3, TJ)
    tgt_jT = colsT[3:6, :]

    def pdist(a, bT):
        # ||a_i - b_j||  via  sq_a + sq_b - 2 a.b  (cross gram on the MXU,
        # natural (M,K)x(K,N) form -> no transposes).
        sq_a = jnp.sum(a * a, axis=1, keepdims=True)          # (TI, 1)
        sq_b = jnp.sum(bT * bT, axis=0, keepdims=True)        # (1, TJ)
        gram = jnp.dot(a, bT, preferred_element_type=jnp.float32)  # (TI, TJ)
        d2 = sq_a + sq_b - 2.0 * gram
        # NOTE: gram-matrix distances lose precision for nearly coincident
        # points (catastrophic cancellation); fine at 1e-3 tolerances.
        return jnp.sqrt(jnp.maximum(d2, 0.0))

    diff = pdist(src_i, src_jT) - pdist(tgt_i, tgt_jT)
    out_ref[...] = jnp.maximum(1.0 - diff * diff * inv_sigma2, 0.0)


def spatial_compatibility(vec_6d, sigma, *, tile=512):
    """Compute the (B, N, N) compatibility map with a tiled Pallas kernel."""
    B, N, _ = vec_6d.shape
    inv_sigma2 = float(1.0 / (sigma * sigma))

    # Pick tile sizes honouring the (8, 128) block constraints and keeping the
    # double-buffered output tile well under VMEM (512x512 f32 = 1 MiB/tile).
    if N <= tile:
        N_pad = _round_up(N, 128)
        TI = TJ = N_pad
    else:
        N_pad = _round_up(N, tile)
        TI = TJ = tile

    v = vec_6d.astype(jnp.float32)
    if N_pad != N:
        v = jnp.zeros((B, N_pad, 6), jnp.float32).at[:, :N, :].set(v)
    vT = jnp.swapaxes(v, 1, 2)                     # (B, 6, N_pad) lane-dense

    out = pl.pallas_call(
        lambda r, c, o: _compat_kernel(r, c, o, inv_sigma2=inv_sigma2),
        out_shape=jax.ShapeDtypeStruct((B, N_pad, N_pad), jnp.float32),
        grid_spec=pltpu.PrefetchScalarGridSpec(
            num_scalar_prefetch=0,
            grid=(B, N_pad // TI, N_pad // TJ),
            in_specs=[
                pl.BlockSpec((None, TI, 6), lambda b, i, j: (b, i, 0)),
                pl.BlockSpec((None, 6, TJ), lambda b, i, j: (b, 0, j)),
            ],
            out_specs=pl.BlockSpec((None, TI, TJ), lambda b, i, j: (b, i, j)),
        ),
        compiler_params=pltpu.CompilerParams(
            dimension_semantics=("parallel", "parallel", "parallel")),
    )(v, vT)

    if N_pad != N:
        out = out[:, :N, :N]
    return out


# ---------------------------------------------------------------------------
# Kernel 2: fused in_proj + classification head (transposed, lane-dense)
#   xT (6, tm):  WinT @ xT + binT -> feat (F, tm)
#   relu(W1T @ feat + b1T) -> (64, tm)
#   relu(W2T @ h   + b2T) -> (32, tm)
#   sigmoid(W3T @ h + b3T) -> (1, tm)  lane-dense output row
# ---------------------------------------------------------------------------
def _mlp_kernel(xT_ref, winT_ref, binT_ref, w1T_ref, b1T_ref, w2T_ref, b2T_ref,
                w3T_ref, b3T_ref, out_ref):
    xT = xT_ref[...]                                              # (6, tm)
    feat = jnp.dot(winT_ref[...], xT,
                   preferred_element_type=jnp.float32) + binT_ref[...]   # (F, tm)
    # TODO(synk): _6D_geometry_layers (CorrespondenceAttentionLayer) undefined
    # in the reference source -> treated as identity on `feat`.
    h = jnp.maximum(jnp.dot(w1T_ref[...], feat,
                            preferred_element_type=jnp.float32) + b1T_ref[...], 0.0)
    h = jnp.maximum(jnp.dot(w2T_ref[...], h,
                            preferred_element_type=jnp.float32) + b2T_ref[...], 0.0)
    logit = jnp.dot(w3T_ref[...], h,
                    preferred_element_type=jnp.float32) + b3T_ref[...]    # (1, tm)
    out_ref[...] = jax.nn.sigmoid(logit)


def fused_proj_classify(x6, params, *, tm=1024):
    """x6: (R, 6) rows.  Returns confidence (R,)."""
    R = x6.shape[0]
    win, bin_, w1, b1, w2, b2, w3, b3 = params
    F = win.shape[1]

    # Pad rows to a multiple of the row tile (no silently dropped tail rows)
    # and transpose so rows sit on the 128-wide lane axis.
    R_pad = _round_up(R, tm)
    xT = jnp.zeros((6, R_pad), jnp.float32).at[:, :R].set(
        x6.astype(jnp.float32).T)

    winT, w1T, w2T, w3T = win.T, w1.T, w2.T, w3.T        # (F,6)(64,F)(32,64)(1,32)
    binT, b1T, b2T, b3T = bin_.T, b1.T, b2.T, b3.T       # (F,1)(64,1)(32,1)(1,1)

    full = lambda i: (0, 0)
    out = pl.pallas_call(
        _mlp_kernel,
        out_shape=jax.ShapeDtypeStruct((1, R_pad), jnp.float32),
        grid_spec=pltpu.PrefetchScalarGridSpec(
            num_scalar_prefetch=0,
            grid=(R_pad // tm,),
            in_specs=[
                pl.BlockSpec((6, tm), lambda i: (0, i)),
                pl.BlockSpec((F, 6), full),
                pl.BlockSpec((F, 1), full),
                pl.BlockSpec((64, F), full),
                pl.BlockSpec((64, 1), full),
                pl.BlockSpec((32, 64), full),
                pl.BlockSpec((32, 1), full),
                pl.BlockSpec((1, 32), full),
                pl.BlockSpec((1, 1), full),
            ],
            out_specs=pl.BlockSpec((1, tm), lambda i: (0, i)),
        ),
        compiler_params=pltpu.CompilerParams(dimension_semantics=("parallel",)),
    )(xT, winT, binT, w1T, b1T, w2T, b2T, w3T, b3T)
    return out[0, :R]


# ---------------------------------------------------------------------------
# Glue: _3D_to_6D (gather correspondences, pad to max length)
# ---------------------------------------------------------------------------
def three_d_to_six_d(s_pcd, t_pcd, coarse_match_pred):
    ind = np.asarray(coarse_match_pred)
    bi, si, ti = ind[:, 0], ind[:, 1], ind[:, 2]
    b_size = s_pcd.shape[0]
    vec_list, lens = [], []
    for i in range(b_size):
        m = bi == i
        s_pos = s_pcd[i][si[m]]
        t_pos = t_pcd[i][ti[m]]
        vec_list.append(jnp.concatenate([s_pos, t_pos], axis=1))
        lens.append(int(m.sum()))
    L = max(lens)
    vec = jnp.zeros((b_size, L, 6), dtype=s_pcd.dtype)
    mask = jnp.zeros((b_size, L), dtype=bool)
    for i in range(b_size):
        vec = vec.at[i, : lens[i]].set(vec_list[i])
        mask = mask.at[i, : lens[i]].set(True)
    return vec, mask


# ---------------------------------------------------------------------------
# Parameter init (deterministic, xavier-style scaling)
# ---------------------------------------------------------------------------
def init_params(key, in_dim, feature_dim):
    shapes = [(in_dim, feature_dim), (feature_dim, 64), (64, 32), (32, 1)]
    params = []
    for i, (fi, fo) in enumerate(shapes):
        kw, kb = jax.random.split(jax.random.fold_in(key, i))
        std = np.sqrt(2.0 / (fi + fo))
        w = (std * jax.random.normal(kw, (fi, fo))).astype(jnp.float32)
        b = (0.01 * jax.random.normal(kb, (1, fo))).astype(jnp.float32)
        params += [w, b]
    return params


# ---------------------------------------------------------------------------
# Full forward
# ---------------------------------------------------------------------------
def outlier_rejection_forward(data, params, config):
    vec_6d, vec_6d_mask = three_d_to_six_d(
        data["s_pcd"], data["t_pcd"], data["coarse_match_pred"])
    B, N, _ = vec_6d.shape

    if config["spatial_consistency_check"]:
        corr_compat = spatial_compatibility(vec_6d, config["sigma_spat"])
    else:
        corr_compat = None

    # pe_type == 'none' -> pe_6d = None (exact forward branch)

    x6 = vec_6d.reshape(B * N, 6).astype(jnp.float32)
    conf = fused_proj_classify(x6, params)          # (B*N,)
    confidence = conf.reshape(B, N)                 # == .squeeze(-1) on (B,N,1)
    # NOTE: padded correspondence rows produce confidences / compat entries
    # that the caller must mask with vec_6d_mask (matches reference module).
    return confidence, corr_compat, vec_6d_mask


if __name__ == "__main__":
    config = dict(num_layers=6, pe_type="none", in_dim=6, feature_dim=128,
                  sigma_spat=0.1, spatial_consistency_check=True)

    key = jax.random.PRNGKey(0)
    k_s, k_t, k_i0, k_i1, k_p = jax.random.split(key, 5)

    B, P = 2, 64                       # two point clouds, 64 points each
    counts = [128, 96]                 # matches per batch (pad to 128)
    s_pcd = jax.random.normal(k_s, (B, P, 3), dtype=jnp.float32)
    t_pcd = jax.random.normal(k_t, (B, P, 3), dtype=jnp.float32)

    rows = []
    for b, (kk, c) in enumerate(zip([k_i0, k_i1], counts)):
        idx = jax.random.randint(kk, (c, 2), 0, P)
        bcol = jnp.full((c, 1), b, dtype=jnp.int32)
        rows.append(jnp.concatenate([bcol, idx.astype(jnp.int32)], axis=1))
    coarse_match_pred = jnp.concatenate(rows, axis=0)   # (224, 3)

    data = dict(s_pcd=s_pcd, t_pcd=t_pcd, coarse_match_pred=coarse_match_pred)
    params = init_params(k_p, config["in_dim"], config["feature_dim"])

    confidence, compat, mask = outlier_rejection_forward(data, params, config)
    jax.block_until_ready((confidence, compat, mask))

    # lightweight plain-JAX reference check
    vec_6d, _ = three_d_to_six_d(s_pcd, t_pcd, coarse_match_pred)
    src, tgt = vec_6d[..., :3], vec_6d[..., 3:]
    sd = jnp.linalg.norm(src[:, :, None, :] - src[:, None, :, :], axis=-1)
    td = jnp.linalg.norm(tgt[:, :, None, :] - tgt[:, None, :, :], axis=-1)
    compat_ref = jnp.maximum(1.0 - (sd - td) ** 2 / config["sigma_spat"] ** 2, 0.0)
    win, bin_, w1, b1, w2, b2, w3, b3 = params
    f = vec_6d.reshape(-1, 6) @ win + bin_
    h = jnp.maximum(f @ w1 + b1, 0.0)
    h = jnp.maximum(h @ w2 + b2, 0.0)
    conf_ref = jax.nn.sigmoid(h @ w3 + b3).reshape(confidence.shape)
    assert jnp.max(jnp.abs(compat - compat_ref)) < 1e-3
    assert jnp.max(jnp.abs(confidence - conf_ref)) < 1e-4

    print("KERNEL_OK")
</pallas_src>

<mosaic_0001>
module attributes {stable_mosaic.version = 11 : i64} {
  func.func @_lambda_(%arg0: i32, %arg1: i32, %arg2: i32, %arg3: memref<1x128x6xf32, #tpu.memory_space<vmem>>, %arg4: memref<1x6x128xf32, #tpu.memory_space<vmem>>, %arg5: memref<1x128x128xf32, #tpu.memory_space<vmem>>) attributes {dimension_semantics = [#tpu.dimension_semantics<parallel>, #tpu.dimension_semantics<parallel>, #tpu.dimension_semantics<parallel>], iteration_bounds = array<i64: 2, 1, 1>, scalar_prefetch = 0 : i64, scratch_operands = 0 : i64, tpu.core_type = #tpu.core_type<tc>, window_params = [{transform_indices = @transform_0, window_bounds = array<i64: 1, 128, 6>}, {transform_indices = @transform_1, window_bounds = array<i64: 1, 6, 128>}, {transform_indices = @transform_2, window_bounds = array<i64: 1, 128, 128>}]} {
    %c0 = arith.constant 0 : index
    %c0_0 = arith.constant 0 : index
    %c0_1 = arith.constant 0 : index
    %0 = vector.load %arg3[%c0, %c0_0, %c0_1] : memref<1x128x6xf32, #tpu.memory_space<vmem>>, vector<1x128x6xf32>
    %1 = vector.shape_cast %0 : vector<1x128x6xf32> to vector<128x6xf32>
    %c0_2 = arith.constant 0 : index
    %c0_3 = arith.constant 0 : index
    %c0_4 = arith.constant 0 : index
    %2 = vector.load %arg4[%c0_2, %c0_3, %c0_4] : memref<1x6x128xf32, #tpu.memory_space<vmem>>, vector<1x6x128xf32>
    %3 = vector.shape_cast %2 : vector<1x6x128xf32> to vector<6x128xf32>
    %4 = vector.extract_strided_slice %1 {offsets = [0, 0], sizes = [128, 3], strides = [1, 1]} : vector<128x6xf32> to vector<128x3xf32>
    %5 = vector.extract_strided_slice %1 {offsets = [0, 3], sizes = [128, 3], strides = [1, 1]} : vector<128x6xf32> to vector<128x3xf32>
    %6 = vector.extract_strided_slice %3 {offsets = [0, 0], sizes = [3, 128], strides = [1, 1]} : vector<6x128xf32> to vector<3x128xf32>
    %7 = vector.extract_strided_slice %3 {offsets = [3, 0], sizes = [3, 128], strides = [1, 1]} : vector<6x128xf32> to vector<3x128xf32>
    %8 = arith.mulf %4, %4 : vector<128x3xf32>
    %cst = arith.constant dense<0.000000e+00> : vector<128xf32>
    %9 = vector.multi_reduction <add>, %8, %cst [1] : vector<128x3xf32> to vector<128xf32>
    %10 = vector.shape_cast %9 : vector<128xf32> to vector<128x1xf32>
    %11 = arith.mulf %6, %6 : vector<3x128xf32>
    %cst_5 = arith.constant dense<0.000000e+00> : vector<128xf32>
    %12 = vector.multi_reduction <add>, %11, %cst_5 [0] : vector<3x128xf32> to vector<128xf32>
    %13 = vector.shape_cast %12 : vector<128xf32> to vector<1x128xf32>
    %cst_6 = arith.constant dense<0.000000e+00> : vector<128x128xf32>
    %14 = tpu.matmul %4, %6, %cst_6 {dimension_numbers = #tpu.dot_dimension_numbers<[1], [0], [0], [1], [0, 0, 1, 1], [], []>} : vector<128x3xf32>, vector<3x128xf32>, vector<128x128xf32> -> vector<128x128xf32>
    %15 = vector.broadcast %10 : vector<128x1xf32> to vector<128x128xf32>
    %16 = vector.broadcast %13 : vector<1x128xf32> to vector<128x128xf32>
    %17 = arith.addf %15, %16 : vector<128x128xf32>
    %cst_7 = arith.constant 2.000000e+00 : f32
    %18 = vector.broadcast %cst_7 : f32 to vector<128x128xf32>
    %19 = arith.mulf %18, %14 : vector<128x128xf32>
    %20 = arith.subf %17, %19 : vector<128x128xf32>
    %cst_8 = arith.constant 0.000000e+00 : f32
    %21 = vector.broadcast %cst_8 : f32 to vector<128x128xf32>
    %22 = arith.maximumf %20, %21 : vector<128x128xf32>
    %23 = math.sqrt %22 : vector<128x128xf32>
    %24 = arith.mulf %5, %5 : vector<128x3xf32>
    %cst_9 = arith.constant dense<0.000000e+00> : vector<128xf32>
    %25 = vector.multi_reduction <add>, %24, %cst_9 [1] : vector<128x3xf32> to vector<128xf32>
    %26 = vector.shape_cast %25 : vector<128xf32> to vector<128x1xf32>
    %27 = arith.mulf %7, %7 : vector<3x128xf32>
    %cst_10 = arith.constant dense<0.000000e+00> : vector<128xf32>
    %28 = vector.multi_reduction <add>, %27, %cst_10 [0] : vector<3x128xf32> to vector<128xf32>
    %29 = vector.shape_cast %28 : vector<128xf32> to vector<1x128xf32>
    %cst_11 = arith.constant dense<0.000000e+00> : vector<128x128xf32>
    %30 = tpu.matmul %5, %7, %cst_11 {dimension_numbers = #tpu.dot_dimension_numbers<[1], [0], [0], [1], [0, 0, 1, 1], [], []>} : vector<128x3xf32>, vector<3x128xf32>, vector<128x128xf32> -> vector<128x128xf32>
    %31 = vector.broadcast %26 : vector<128x1xf32> to vector<128x128xf32>
    %32 = vector.broadcast %29 : vector<1x128xf32> to vector<128x128xf32>
    %33 = arith.addf %31, %32 : vector<128x128xf32>
    %cst_12 = arith.constant 2.000000e+00 : f32
    %34 = vector.broadcast %cst_12 : f32 to vector<128x128xf32>
    %35 = arith.mulf %34, %30 : vector<128x128xf32>
    %36 = arith.subf %33, %35 : vector<128x128xf32>
    %cst_13 = arith.constant 0.000000e+00 : f32
    %37 = vector.broadcast %cst_13 : f32 to vector<128x128xf32>
    %38 = arith.maximumf %36, %37 : vector<128x128xf32>
    %39 = math.sqrt %38 : vector<128x128xf32>
    %40 = arith.subf %23, %39 : vector<128x128xf32>
    %41 = arith.mulf %40, %40 : vector<128x128xf32>
    %cst_14 = arith.constant 1.000000e+02 : f32
    %42 = vector.broadcast %cst_14 : f32 to vector<128x128xf32>
    %43 = arith.mulf %41, %42 : vector<128x128xf32>
    %cst_15 = arith.constant 1.000000e+00 : f32
    %44 = vector.broadcast %cst_15 : f32 to vector<128x128xf32>
    %45 = arith.subf %44, %43 : vector<128x128xf32>
    %cst_16 = arith.constant 0.000000e+00 : f32
    %46 = vector.broadcast %cst_16 : f32 to vector<128x128xf32>
    %47 = arith.maximumf %45, %46 : vector<128x128xf32>
    %c0_17 = arith.constant 0 : index
    %c0_18 = arith.constant 0 : index
    %c0_19 = arith.constant 0 : index
    %48 = vector.load %arg5[%c0_17, %c0_18, %c0_19] : memref<1x128x128xf32, #tpu.memory_space<vmem>>, vector<1x128x128xf32>
    %49 = vector.shape_cast %48 : vector<1x128x128xf32> to vector<128x128xf32>
    %50 = vector.shape_cast %47 : vector<128x128xf32> to vector<1x128x128xf32>
    tpu.vector_store %arg5[%c0_17, %c0_18, %c0_19], %50 {strides = array<i32>} : memref<1x128x128xf32, #tpu.memory_space<vmem>>, vector<1x128x128xf32>,
    return
  }
  func.func @transform_0(%arg0: i32, %arg1: i32, %arg2: i32) -> (i32, i32, i32) {
    %c0_i32 = arith.constant 0 : i32
    %c0_i32_0 = arith.constant 0 : i32
    return %arg0, %arg1, %c0_i32 : i32, i32, i32
  }
  func.func @transform_1(%arg0: i32, %arg1: i32, %arg2: i32) -> (i32, i32, i32) {
    %c0_i32 = arith.constant 0 : i32
    %c0_i32_0 = arith.constant 0 : i32
    return %arg0, %c0_i32, %arg2 : i32, i32, i32
  }
  func.func @transform_2(%arg0: i32, %arg1: i32, %arg2: i32) -> (i32, i32, i32) {
    %c0_i32 = arith.constant 0 : i32
    return %arg0, %arg1, %arg2 : i32, i32, i32
  }
}

</mosaic_0001>

<llo_original>
// kernel: tpu_custom_call.1
$region0: #{tpu_custom_call.1}
  #allocation0 [shape = 'u32[]', space=smem, size = 0x4, offset = 0x4, fixed_abs, tag = 'smem constant byte address 0x4 - core index']
  #allocation1 [shape = 'u32[144,128]{1,0:T(1,128)}', space=vmem, size = 0x12000, scoped, tag = 'internal scratch']
  %s0 = inlined_call_operand.vmem [shape: f32[2,128,6], index: 0, kind: input, shape index: {}]
  %s1 = inlined_call_operand.vmem [shape: f32[2,6,128], index: 1, kind: input, shape index: {}]
  %s2 = inlined_call_operand.hbm [shape: f32[2,128,128], index: 2, kind: output, shape index: {}]
  %s3 = sld [smem:[#allocation0]]
  $region41: #{tpu_custom_call.1} parent=0
    _
  %s5 = ssub.s32 1, %s3
  %s6 = scalar_select 0, %s5, %s3
  $region1: #{tpu_custom_call.1} parent=0
    #allocation2 [shape = 'u8[131072]{0}', space=vmem, size = 0x20000, scoped, tag = 'output window, operand 0']
    #allocation3 [shape = 's32[2]{0}', space=sflag, size = 0x8, scoped, tag = 'scoped memory for tpu_custom_call.1']
    %7 = vsyncpa [#allocation3], 0
    %s8 = scalar_lea.sflag [#allocation3], 1
    %9 = vsyncpa %s8, 0
    loop: start=0, step=1, limit=4
    $region2: #{tpu_custom_call.1} parent=1 // loop_pre_header
      _
    $region3: #{tpu_custom_call.1} parent=1 // loop_header
      %s11 = sphi 0, %s15
      %p12 = scmp.ge.s32.totalorder %s11, 4
      %s18 = sphi 0, %s37
      %s19 = sphi 0, %s33
      %s20 = sphi 0, %s29
      %s21 = sphi 0, %s18
      %s22 = sphi 0, %s19
      %s23 = sphi 0, %s20
      %s24 = sphi 0, %s21
      %s25 = sphi 0, %s22
      %s26 = sphi 0, %s23
      %s42 = sphi 0, %s44
      %s45 = sphi 0, %s42
      %s46 = sphi 0, %s45
      %s62 = sphi 0, %s46
      %s70 = sphi 0, %s72
      %s73 = sphi 0, %s70
      %s74 = sphi 0, %s73
      %s90 = sphi 0, %s74
      %s100 = sphi 0, %s102
      %s103 = sphi 0, %s100
      %s104 = sphi 0, %s103
      %s120 = sphi 0, %s104
    $region4: #{tpu_custom_call.1} parent=1 // loop_header_branch
      %14 = sbr.rel (%p12) target = $region8
    $region5: #{tpu_custom_call.1} parent=1 // loop_body
      %s16 = ssub.s32 %s11, 1
      %s17 = ssub.s32 %s11, 2
      %s27 = sadd.s32 1, %s20
      %p28 = scmp.ge.s32.totalorder %s27, 1
      %s29 = scalar_select %p28, 0, %s27
      %s30 = sadd.s32 1, %s19
      %s31 = scalar_select %p28, %s30, %s19
      %p32 = scmp.ge.s32.totalorder %s31, 1
      %s33 = scalar_select %p32, 0, %s31
      %s34 = sadd.s32 1, %s18
      %s35 = scalar_select %p32, %s34, %s18
      %p36 = scmp.ge.s32.totalorder %s35, 2
      %s37 = scalar_select %p36, 0, %s35
      %s38 = ssub.s32 %s18, %s37
      %s39 = ssub.s32 %s19, %s33
      %s40 = sor.u32 %s38, %s39
      %p41 = scmp.eq.s32.totalorder %s40, 0
      %s43 = sadd.s32 %s42, 1
      %s44 = scalar_select %p41, %s42, %s43
      %p47 = pneg %p41
      %p48 = scmp.eq.s32.totalorder %s11, 1
      %p49 = por %p47, %p48
      %p50 = scmp.ne.s32.totalorder %s42, %s45
      %p51 = scmp.eq.s32.totalorder %s11, 0
      %p52 = por %p50, %p51
      %p53 = scmp.ne.s32.totalorder %s42, %s45
      %p54 = scmp.eq.s32.totalorder %s16, 1
      %p55 = por %p53, %p54
      %p56 = scmp.ne.s32.totalorder %s45, %s46
      %p57 = scmp.eq.s32.totalorder %s16, 0
      %p58 = por %p56, %p57
      %p59 = scmp.ne.s32.totalorder %s45, %s46
      %p60 = scmp.eq.s32.totalorder %s17, 1
      %p61 = por %p59, %p60
      %p63 = scmp.ne.s32.totalorder %s46, %s62
      %p64 = scmp.eq.s32.totalorder %s17, 0
      %p65 = por %p63, %p64
      %s66 = ssub.s32 %s18, %s37
      %s67 = ssub.s32 %s20, %s29
      %s68 = sor.u32 %s66, %s67
      %p69 = scmp.eq.s32.totalorder %s68, 0
      %s71 = sadd.s32 %s70, 1
      %s72 = scalar_select %p69, %s70, %s71
      %p75 = pneg %p69
      %p76 = scmp.eq.s32.totalorder %s11, 1
      %p77 = por %p75, %p76
      %p78 = scmp.ne.s32.totalorder %s70, %s73
      %p79 = scmp.eq.s32.totalorder %s11, 0
      %p80 = por %p78, %p79
      %p81 = scmp.ne.s32.totalorder %s70, %s73
      %p82 = scmp.eq.s32.totalorder %s16, 1
      %p83 = por %p81, %p82
      %p84 = scmp.ne.s32.totalorder %s73, %s74
      %p85 = scmp.eq.s32.totalorder %s16, 0
      %p86 = por %p84, %p85
      %p87 = scmp.ne.s32.totalorder %s73, %s74
      %p88 = scmp.eq.s32.totalorder %s17, 1
      %p89 = por %p87, %p88
      %p91 = scmp.ne.s32.totalorder %s74, %s90
      %p92 = scmp.eq.s32.totalorder %s17, 0
      %p93 = por %p91, %p92
      %s94 = ssub.s32 %s18, %s37
      %s95 = ssub.s32 %s19, %s33
      %s96 = sor.u32 %s94, %s95
      %s97 = ssub.s32 %s20, %s29
      %s98 = sor.u32 %s96, %s97
      %p99 = scmp.eq.s32.totalorder %s98, 0
      %s101 = sadd.s32 %s100, 1
      %s102 = scalar_select %p99, %s100, %s101
      %p105 = pneg %p99
      %p106 = scmp.eq.s32.totalorder %s11, 1
      %p107 = por %p105, %p106
      %p108 = scmp.ne.s32.totalorder %s100, %s103
      %p109 = scmp.eq.s32.totalorder %s11, 0
      %p110 = por %p108, %p109
      %p111 = scmp.ne.s32.totalorder %s100, %s103
      %p112 = scmp.eq.s32.totalorder %s16, 1
      %p113 = por %p111, %p112
      %p114 = scmp.ne.s32.totalorder %s103, %s104
      %p115 = scmp.eq.s32.totalorder %s16, 0
      %p116 = por %p114, %p115
      %p117 = scmp.ne.s32.totalorder %s103, %s104
      %p118 = scmp.eq.s32.totalorder %s17, 1
      %p119 = por %p117, %p118
      %p121 = scmp.ne.s32.totalorder %s104, %s120
      %p122 = scmp.eq.s32.totalorder %s17, 0
      %p123 = por %p121, %p122
      %p124 = scmp.le.s32.totalorder 1, %s11
      %p125 = scmp.lt.s32.totalorder %s11, 3
      %p126 = pnand %p124, %p125
      %p127 = pneg %p126
      // Predicated region
      $region9: #{tpu_custom_call.1} parent=5 // pred_check
        _
      $region10: #{tpu_custom_call.1} parent=5 // pred_check_branch
        %129 = sbr.rel (%p126) target = $region12
      $region11: #{tpu_custom_call.1} parent=5 // pred_region
        %s130 = ssub.s32 %s11, 1
      $region12: #{tpu_custom_call.1} parent=5 // pred_fallthru
        _
      %p131 = scmp.lt.s32.totalorder %s11, 2
      // Predicated region
      $region13: #{tpu_custom_call.1} parent=5 // pred_check
        %p132 = pneg %p131
      $region14: #{tpu_custom_call.1} parent=5 // pred_check_branch
        %134 = sbr.rel (%p132) target = $region16
      $region15: #{tpu_custom_call.1} parent=5 // pred_region
        // Predicated region
        $region17: #{tpu_custom_call.1} parent=15 // pred_check
          %p135 = pneg %p52
        $region18: #{tpu_custom_call.1} parent=15 // pred_check_branch
          %137 = sbr.rel (%p135) target = $region20
        $region19: #{tpu_custom_call.1} parent=15 // pred_region
          %s138 = smul.u32 16, %s19
          %p139 = scmp.lt.s32.totalorder %s18, 1
          %s140 = scalar_select %p139, %s18, 1
          %p141 = scmp.lt.s32.totalorder %s138, 15
          %s142 = scalar_select %p141, %s138, 15
          %s143 = smul.addr %s140, 16
          %s144 = sadd.s32 %s142, %s143
          %s145 = smul.addr %s144, 8
          %s146 = scalar_lea.vmem %s0, %s145
          %s147 = smul.u32 16, %s19
        $region20: #{tpu_custom_call.1} parent=15 // pred_fallthru
          _
        // Predicated region
        $region21: #{tpu_custom_call.1} parent=15 // pred_check
          %p148 = pneg %p80
        $region22: #{tpu_custom_call.1} parent=15 // pred_check_branch
          %150 = sbr.rel (%p148) target = $region24
        $region23: #{tpu_custom_call.1} parent=15 // pred_region
          %p151 = scmp.lt.s32.totalorder %s18, 1
          %s152 = scalar_select %p151, %s18, 1
          %p153 = scmp.lt.s32.totalorder %s20, 0
          %s154 = scalar_select %p153, %s20, 0
          %s155 = sadd.s32 %s154, %s152
          %s156 = smul.addr %s155, 8
          %s157 = scalar_lea.vmem %s1, %s156
        $region24: #{tpu_custom_call.1} parent=15 // pred_fallthru
          _
      $region16: #{tpu_custom_call.1} parent=5 // pred_fallthru
        _
      %p158 = scmp.le.s32.totalorder 1, %s11
      %p159 = scmp.lt.s32.totalorder %s11, 3
      %p160 = pnand %p158, %p159
      %p161 = pneg %p160
      // Predicated region
      $region25: #{tpu_custom_call.1} parent=5 // pred_check
        _
      $region26: #{tpu_custom_call.1} parent=5 // pred_check_branch
        %163 = sbr.rel (%p160) target = $region28
      $region27: #{tpu_custom_call.1} parent=5 // pred_region
        %s164 = ssub.s32 %s11, 1
        %s165 = smul.u32 16, %s22
        %p166 = scmp.lt.s32.totalorder %s21, 1
        %s167 = scalar_select %p166, %s21, 1
        %p168 = scmp.lt.s32.totalorder %s165, 15
        %s169 = scalar_select %p168, %s165, 15
        %s170 = smul.addr %s167, 16
        %s171 = sadd.s32 %s169, %s170
        %s172 = smul.addr %s171, 8
        %s173 = scalar_lea.vmem %s0, %s172
        %p174 = pneg %p58
        %p175 = pneg %p55
        %p176 = scmp.lt.s32.totalorder %s21, 1
        %s177 = scalar_select %p176, %s21, 1
        %p178 = scmp.lt.s32.totalorder %s23, 0
        %s179 = scalar_select %p178, %s23, 0
        %s180 = sadd.s32 %s179, %s177
        %s181 = smul.addr %s180, 8
        %s182 = scalar_lea.vmem %s1, %s181
        %p183 = pneg %p86
        %p184 = pneg %p83
        %p185 = pneg %p116
        %p186 = pneg %p113
        %s187 = sand.u32 %s103, 1
        %s188 = scalar_lea.sflag [#allocation3], %s187
        %s189 = sand.u32 %s103, 1
        %s190 = smul.addr %s189, 128
        %s191 = scalar_lea.vmem [#allocation2], %s190
        %s192 = smul.u32 16, %s22
        %p193 = scmp.lt.s32.totalorder %s21, 1
        %s194 = scalar_select %p193, %s21, 1
        %p195 = scmp.lt.s32.totalorder %s192, 15
        %s196 = scalar_select %p195, %s192, 15
        %s197 = smul.addr %s194, 16
        %s198 = sadd.s32 %s196, %s197
        %s199 = smul.addr %s198, 8
        %s200 = scalar_lea.vmem %s0, %s199
        %s201 = smul.u32 16, %s22
        %p202 = scmp.lt.s32.totalorder %s21, 1
        %s203 = scalar_select %p202, %s21, 1
        %p204 = scmp.lt.s32.totalorder %s23, 0
        %s205 = scalar_select %p204, %s23, 0
        %s206 = sadd.s32 %s205, %s203
        %s207 = smul.addr %s206, 8
        %s208 = scalar_lea.vmem %s1, %s207
        %s209 = smul.u32 16, %s22
        %v210 = vld [vmem:[%s200] sm:$0xff]
        %v211 = vld [vmem:[%s200 + $0x8] sm:$0xff]
        %v212 = vld [vmem:[%s200 + $0x10] sm:$0xff]
        %v213 = vld [vmem:[%s200 + $0x18] sm:$0xff]
        %v214 = vld [vmem:[%s200 + $0x20] sm:$0xff]
        %v215 = vld [vmem:[%s200 + $0x28] sm:$0xff]
        %v216 = vld [vmem:[%s200 + $0x30] sm:$0xff]
        %v217 = vld [vmem:[%s200 + $0x38] sm:$0xff]
        %v218 = vld [vmem:[%s200 + $0x40] sm:$0xff]
        %v219 = vld [vmem:[%s200 + $0x48] sm:$0xff]
        %v220 = vld [vmem:[%s200 + $0x50] sm:$0xff]
        %v221 = vld [vmem:[%s200 + $0x58] sm:$0xff]
        %v222 = vld [vmem:[%s200 + $0x60] sm:$0xff]
        %v223 = vld [vmem:[%s200 + $0x68] sm:$0xff]
        %v224 = vld [vmem:[%s200 + $0x70] sm:$0xff]
        %v225 = vld [vmem:[%s200 + $0x78] sm:$0xff]
        %v226 = vld [vmem:[%s208] sm:$0x3f]
        %v227 = vmul.f32 %v210, %v210
        %v228 = vmul.f32 %v211, %v211
        %v229 = vmul.f32 %v212, %v212
        %v230 = vmul.f32 %v213, %v213
        %v231 = vmul.f32 %v214, %v214
        %v232 = vmul.f32 %v215, %v215
        %v233 = vmul.f32 %v216, %v216
        %v234 = vmul.f32 %v217, %v217
        %v235 = vmul.f32 %v218, %v218
        %v236 = vmul.f32 %v219, %v219
        %v237 = vmul.f32 %v220, %v220
        %v238 = vmul.f32 %v221, %v221
        %v239 = vmul.f32 %v222, %v222
        %v240 = vmul.f32 %v223, %v223
        %v241 = vmul.f32 %v224, %v224
        %v242 = vmul.f32 %v225, %v225
        %vm243 = vcmask 23552
        %v244 = vsel %vm243, %v227, 0.0
        %245 = vadd.xlane.f32.xlu0 %v244
        %v246 = vpop.xlane.xlu0 %245
        %v247 = vsel %vm243, %v228, 0.0
        %248 = vadd.xlane.f32.xlu0 %v247
        %v249 = vpop.xlane.xlu0 %248
        %v250 = vsel %vm243, %v229, 0.0
        %251 = vadd.xlane.f32.xlu0 %v250
        %v252 = vpop.xlane.xlu0 %251
        %v253 = vsel %vm243, %v230, 0.0
        %254 = vadd.xlane.f32.xlu0 %v253
        %v255 = vpop.xlane.xlu0 %254
        %v256 = vsel %vm243, %v231, 0.0
        %257 = vadd.xlane.f32.xlu0 %v256
        %v258 = vpop.xlane.xlu0 %257
        %v259 = vsel %vm243, %v232, 0.0
        %260 = vadd.xlane.f32.xlu0 %v259
        %v261 = vpop.xlane.xlu0 %260
        %v262 = vsel %vm243, %v233, 0.0
        %263 = vadd.xlane.f32.xlu0 %v262
        %v264 = vpop.xlane.xlu0 %263
        %v265 = vsel %vm243, %v234, 0.0
        %266 = vadd.xlane.f32.xlu0 %v265
        %v267 = vpop.xlane.xlu0 %266
        %v268 = vsel %vm243, %v235, 0.0
        %269 = vadd.xlane.f32.xlu0 %v268
        %v270 = vpop.xlane.xlu0 %269
        %v271 = vsel %vm243, %v236, 0.0
        %272 = vadd.xlane.f32.xlu0 %v271
        %v273 = vpop.xlane.xlu0 %272
        %v274 = vsel %vm243, %v237, 0.0
        %275 = vadd.xlane.f32.xlu0 %v274
        %v276 = vpop.xlane.xlu0 %275
        %v277 = vsel %vm243, %v238, 0.0
        %278 = vadd.xlane.f32.xlu0 %v277
        %v279 = vpop.xlane.xlu0 %278
        %v280 = vsel %vm243, %v239, 0.0
        %281 = vadd.xlane.f32.xlu0 %v280
        %v282 = vpop.xlane.xlu0 %281
        %v283 = vsel %vm243, %v240, 0.0
        %284 = vadd.xlane.f32.xlu0 %v283
        %v285 = vpop.xlane.xlu0 %284
        %v286 = vsel %vm243, %v241, 0.0
        %287 = vadd.xlane.f32.xlu0 %v286
        %v288 = vpop.xlane.xlu0 %287
        %v289 = vsel %vm243, %v242, 0.0
        %290 = vadd.xlane.f32.xlu0 %v289
        %v291 = vpop.xlane.xlu0 %290
        %v292 = vmul.f32 %v226, %v226
        %vm293 = vcmask 1042432
        %v294 = vsel %vm293, %v292, 0.0
        %v295 = vrot.slane %v294, 4
        %v296 = vadd.f32 %v294, %v295
        %v297 = vrot.slane %v296, 2
        %v298 = vadd.f32 %v296, %v297
        %v299 = vrot.slane %v298, 1
        %v300 = vadd.f32 %v298, %v299
        %v302 = vsel %vm243, %v210, 0
        %v305 = vsel %vm243, %v211, 0
        %v308 = vsel %vm243, %v212, 0
        %v311 = vsel %vm243, %v213, 0
        %v314 = vsel %vm243, %v214, 0
        %v317 = vsel %vm243, %v215, 0
        %v320 = vsel %vm243, %v216, 0
        %v323 = vsel %vm243, %v217, 0
        %v326 = vsel %vm243, %v218, 0
        %v329 = vsel %vm243, %v219, 0
        %v332 = vsel %vm243, %v220, 0
        %v335 = vsel %vm243, %v221, 0
        %v338 = vsel %vm243, %v222, 0
        %v341 = vsel %vm243, %v223, 0
        %v344 = vsel %vm243, %v224, 0
        %v347 = vsel %vm243, %v225, 0
        %v350 = vsel %vm293, %v226, 0
        %352 = vmatprep.subr.mxu0 0.0
        %353 = vmatpush1.msra.mxu0 %v350
        %354 = vmatprep.subr.mxu0 0.0
        %355 = vmatpush1.msra.mxu0 0.0
        %356 = vmatprep.subr.mxu0 0.0
        %357 = vmatpush1.msra.mxu0 0.0
        %358 = vmatprep.subr.mxu0 0.0
        %359 = vmatpush1.msra.mxu0 0.0
        %360 = vmatprep.subr.mxu0 0.0
        %361 = vmatpush1.msra.mxu0 0.0
        %362 = vmatprep.subr.mxu0 0.0
        %363 = vmatpush1.msra.mxu0 0.0
        %364 = vmatprep.subr.mxu0 0.0
        %365 = vmatpush1.msra.mxu0 0.0
        %366 = vmatprep.subr.mxu0 0.0
        %367 = vmatpush1.msra.mxu0 0.0
        %368 = vmatprep.subr.mxu0 0.0
        %369 = vmatpush1.msra.mxu0 0.0
        %370 = vmatprep.subr.mxu0 0.0
        %371 = vmatpush1.msra.mxu0 0.0
        %372 = vmatprep.subr.mxu0 0.0
        %373 = vmatpush1.msra.mxu0 0.0
        %374 = vmatprep.subr.mxu0 0.0
        %375 = vmatpush1.msra.mxu0 0.0
        %376 = vmatprep.subr.mxu0 0.0
        %377 = vmatpush1.msra.mxu0 0.0
        %378 = vmatprep.subr.mxu0 0.0
        %379 = vmatpush1.msra.mxu0 0.0
        %380 = vmatprep.subr.mxu0 0.0
        %381 = vmatpush1.msra.mxu0 0.0
        %382 = vmatprep.subr.mxu0 0.0
        %383 = vmatpush1.msra.mxu0 0.0
        %384 = vmatprep.subr.mxu0 0.0
        %385 = vmatpush1.msra.mxu0 0.0
        %386 = vmatprep.subr.mxu0 0.0
        %387 = vmatpush1.msra.mxu0 0.0
        %388 = vmatprep.subr.mxu0 0.0
        %389 = vmatpush1.msra.mxu0 0.0
        %390 = vmatprep.subr.mxu0 0.0
        %391 = vmatpush1.msra.mxu0 0.0
        %392 = vmatprep.subr.mxu0 0.0
        %393 = vmatpush1.msra.mxu0 0.0
        %394 = vmatprep.subr.mxu0 0.0
        %395 = vmatpush1.msra.mxu0 0.0
        %396 = vmatprep.subr.mxu0 0.0
        %397 = vmatpush1.msra.mxu0 0.0
        %398 = vmatprep.subr.mxu0 0.0
        %399 = vmatpush1.msra.mxu0 0.0
        %400 = vmatprep.subr.mxu0 0.0
        %401 = vmatpush1.msra.mxu0 0.0
        %402 = vmatprep.subr.mxu0 0.0
        %403 = vmatpush1.msra.mxu0 0.0
        %404 = vmatprep.subr.mxu0 0.0
        %405 = vmatpush1.msra.mxu0 0.0
        %406 = vmatprep.subr.mxu0 0.0
        %407 = vmatpush1.msra.mxu0 0.0
        %408 = vmatprep.subr.mxu0 0.0
        %409 = vmatpush1.msra.mxu0 0.0
        %410 = vmatprep.subr.mxu0 0.0
        %411 = vmatpush1.msra.mxu0 0.0
        %412 = vmatprep.subr.mxu0 0.0
        %413 = vmatpush1.msra.mxu0 0.0
        %414 = vmatprep.subr.mxu0 0.0
        %415 = vmatpush1.msra.mxu0 0.0
        %416 = vmatprep.mubr.f32.mxu0 0.0
        %417 = vmatmul.mubr.f32.gmra.mrb[0].mxu0 %v302
        %v418 = vpop.f32.mrb[0].mxu0
        %v419 = vadd.f32 0.0, %v418
        %v420 = vpop.f32.mrb[0].mxu0
        %421 = vmatprep.mubr.f32.mxu0 0.0
        %422 = vmatmul.mubr.f32.gmra.mrb[0].mxu0 %v305
        %v423 = vpop.f32.mrb[0].mxu0
        %v424 = vadd.f32 0.0, %v423
        %v425 = vpop.f32.mrb[0].mxu0
        %426 = vmatprep.mubr.f32.mxu0 0.0
        %427 = vmatmul.mubr.f32.gmra.mrb[0].mxu0 %v308
        %v428 = vpop.f32.mrb[0].mxu0
        %v429 = vadd.f32 0.0, %v428
        %v430 = vpop.f32.mrb[0].mxu0
        %431 = vmatprep.mubr.f32.mxu0 0.0
        %432 = vmatmul.mubr.f32.gmra.mrb[0].mxu0 %v311
        %v433 = vpop.f32.mrb[0].mxu0
        %v434 = vadd.f32 0.0, %v433
        %v435 = vpop.f32.mrb[0].mxu0
        %436 = vmatprep.mubr.f32.mxu0 0.0
        %437 = vmatmul.mubr.f32.gmra.mrb[0].mxu0 %v314
        %v438 = vpop.f32.mrb[0].mxu0
        %v439 = vadd.f32 0.0, %v438
        %v440 = vpop.f32.mrb[0].mxu0
        %441 = vmatprep.mubr.f32.mxu0 0.0
        %442 = vmatmul.mubr.f32.gmra.mrb[0].mxu0 %v317
        %v443 = vpop.f32.mrb[0].mxu0
        %v444 = vadd.f32 0.0, %v443
        %v445 = vpop.f32.mrb[0].mxu0
        %446 = vmatprep.mubr.f32.mxu0 0.0
        %447 = vmatmul.mubr.f32.gmra.mrb[0].mxu0 %v320
        %v448 = vpop.f32.mrb[0].mxu0
        %v449 = vadd.f32 0.0, %v448
        %v450 = vpop.f32.mrb[0].mxu0
        %451 = vmatprep.mubr.f32.mxu0 0.0
        %452 = vmatmul.mubr.f32.gmra.mrb[0].mxu0 %v323
        %v453 = vpop.f32.mrb[0].mxu0
        %v454 = vadd.f32 0.0, %v453
        %v455 = vpop.f32.mrb[0].mxu0
        %456 = vmatprep.mubr.f32.mxu0 0.0
        %457 = vmatmul.mubr.f32.gmra.mrb[0].mxu0 %v326
        %v458 = vpop.f32.mrb[0].mxu0
        %v459 = vadd.f32 0.0, %v458
        %v460 = vpop.f32.mrb[0].mxu0
        %461 = vmatprep.mubr.f32.mxu0 0.0
        %462 = vmatmul.mubr.f32.gmra.mrb[0].mxu0 %v329
        %v463 = vpop.f32.mrb[0].mxu0
        %v464 = vadd.f32 0.0, %v463
        %v465 = vpop.f32.mrb[0].mxu0
        %466 = vmatprep.mubr.f32.mxu0 0.0
        %467 = vmatmul.mubr.f32.gmra.mrb[0].mxu0 %v332
        %v468 = vpop.f32.mrb[0].mxu0
        %v469 = vadd.f32 0.0, %v468
        %v470 = vpop.f32.mrb[0].mxu0
        %471 = vmatprep.mubr.f32.mxu0 0.0
        %472 = vmatmul.mubr.f32.gmra.mrb[0].mxu0 %v335
        %v473 = vpop.f32.mrb[0].mxu0
        %v474 = vadd.f32 0.0, %v473
        %v475 = vpop.f32.mrb[0].mxu0
        %476 = vmatprep.mubr.f32.mxu0 0.0
        %477 = vmatmul.mubr.f32.gmra.mrb[0].mxu0 %v338
        %v478 = vpop.f32.mrb[0].mxu0
        %v479 = vadd.f32 0.0, %v478
        %v480 = vpop.f32.mrb[0].mxu0
        %481 = vmatprep.mubr.f32.mxu0 0.0
        %482 = vmatmul.mubr.f32.gmra.mrb[0].mxu0 %v341
        %v483 = vpop.f32.mrb[0].mxu0
        %v484 = vadd.f32 0.0, %v483
        %v485 = vpop.f32.mrb[0].mxu0
        %486 = vmatprep.mubr.f32.mxu0 0.0
        %487 = vmatmul.mubr.f32.gmra.mrb[0].mxu0 %v344
        %v488 = vpop.f32.mrb[0].mxu0
        %v489 = vadd.f32 0.0, %v488
        %v490 = vpop.f32.mrb[0].mxu0
        %491 = vmatprep.mubr.f32.mxu0 0.0
        %492 = vmatmul.mubr.f32.gmra.mrb[0].mxu0 %v347
        %v493 = vpop.f32.mrb[0].mxu0
        %v494 = vadd.f32 0.0, %v493
        %v495 = vpop.f32.mrb[0].mxu0
        %496 = vdwg.mxu0
        %v497 = vadd.f32 %v246, %v300
        %v498 = vadd.f32 %v249, %v300
        %v499 = vadd.f32 %v252, %v300
        %v500 = vadd.f32 %v255, %v300
        %v501 = vadd.f32 %v258, %v300
        %v502 = vadd.f32 %v261, %v300
        %v503 = vadd.f32 %v264, %v300
        %v504 = vadd.f32 %v267, %v300
        %v505 = vadd.f32 %v270, %v300
        %v506 = vadd.f32 %v273, %v300
        %v507 = vadd.f32 %v276, %v300
        %v508 = vadd.f32 %v279, %v300
        %v509 = vadd.f32 %v282, %v300
        %v510 = vadd.f32 %v285, %v300
        %v511 = vadd.f32 %v288, %v300
        %v512 = vadd.f32 %v291, %v300
        %v513 = vmul.f32 %v419, 2.0
        %v514 = vmul.f32 %v424, 2.0
        %v515 = vmul.f32 %v429, 2.0
        %v516 = vmul.f32 %v434, 2.0
        %v517 = vmul.f32 %v439, 2.0
        %v518 = vmul.f32 %v444, 2.0
        %v519 = vmul.f32 %v449, 2.0
        %v520 = vmul.f32 %v454, 2.0
        %v521 = vmul.f32 %v459, 2.0
        %v522 = vmul.f32 %v464, 2.0
        %v523 = vmul.f32 %v469, 2.0
        %v524 = vmul.f32 %v474, 2.0
        %v525 = vmul.f32 %v479, 2.0
        %v526 = vmul.f32 %v484, 2.0
        %v527 = vmul.f32 %v489, 2.0
        %v528 = vmul.f32 %v494, 2.0
        %v529 = vsub.f32 %v497, %v513
        %v530 = vsub.f32 %v498, %v514
        %v531 = vsub.f32 %v499, %v515
        %v532 = vsub.f32 %v500, %v516
        %v533 = vsub.f32 %v501, %v517
        %v534 = vsub.f32 %v502, %v518
        %v535 = vsub.f32 %v503, %v519
        %v536 = vsub.f32 %v504, %v520
        %v537 = vsub.f32 %v505, %v521
        %v538 = vsub.f32 %v506, %v522
        %v539 = vsub.f32 %v507, %v523
        %v540 = vsub.f32 %v508, %v524
        %v541 = vsub.f32 %v509, %v525
        %v542 = vsub.f32 %v510, %v526
        %v543 = vsub.f32 %v511, %v527
        %v544 = vsub.f32 %v512, %v528
        %v545 = vmax.f32 %v529, 0.0
        %v546 = vmax.f32 %v530, 0.0
        %v547 = vmax.f32 %v531, 0.0
        %v548 = vmax.f32 %v532, 0.0
        %v549 = vmax.f32 %v533, 0.0
        %v550 = vmax.f32 %v534, 0.0
        %v551 = vmax.f32 %v535, 0.0
        %v552 = vmax.f32 %v536, 0.0
        %v553 = vmax.f32 %v537, 0.0
        %v554 = vmax.f32 %v538, 0.0
        %v555 = vmax.f32 %v539, 0.0
        %v556 = vmax.f32 %v540, 0.0
        %v557 = vmax.f32 %v541, 0.0
        %v558 = vmax.f32 %v542, 0.0
        %v559 = vmax.f32 %v543, 0.0
        %v560 = vmax.f32 %v544, 0.0
        %v561 = vrsqrt.pop %v545
        %v562 = vmul.f32 %v545, %v561
        %vm563 = vcmp.eq.f32.partialorder %v545, inf
        %v564 = vsel %vm563, %v545, %v562
        %vm565 = vcmp.eq.f32.partialorder %v545, 0.0
        %v566 = vand.u32 %v545, 2147483648
        %v567 = vsel %vm565, %v566, %v564
        %v568 = vrsqrt.pop %v546
        %v569 = vmul.f32 %v546, %v568
        %vm570 = vcmp.eq.f32.partialorder %v546, inf
        %v571 = vsel %vm570, %v546, %v569
        %vm572 = vcmp.eq.f32.partialorder %v546, 0.0
        %v573 = vand.u32 %v546, 2147483648
        %v574 = vsel %vm572, %v573, %v571
        %v575 = vrsqrt.pop %v547
        %v576 = vmul.f32 %v547, %v575
        %vm577 = vcmp.eq.f32.partialorder %v547, inf
        %v578 = vsel %vm577, %v547, %v576
        %vm579 = vcmp.eq.f32.partialorder %v547, 0.0
        %v580 = vand.u32 %v547, 2147483648
        %v581 = vsel %vm579, %v580, %v578
        %v582 = vrsqrt.pop %v548
        %v583 = vmul.f32 %v548, %v582
        %vm584 = vcmp.eq.f32.partialorder %v548, inf
        %v585 = vsel %vm584, %v548, %v583
        %vm586 = vcmp.eq.f32.partialorder %v548, 0.0
        %v587 = vand.u32 %v548, 2147483648
        %v588 = vsel %vm586, %v587, %v585
        %v589 = vrsqrt.pop %v549
        %v590 = vmul.f32 %v549, %v589
        %vm591 = vcmp.eq.f32.partialorder %v549, inf
        %v592 = vsel %vm591, %v549, %v590
        %vm593 = vcmp.eq.f32.partialorder %v549, 0.0
        %v594 = vand.u32 %v549, 2147483648
        %v595 = vsel %vm593, %v594, %v592
        %v596 = vrsqrt.pop %v550
        %v597 = vmul.f32 %v550, %v596
        %vm598 = vcmp.eq.f32.partialorder %v550, inf
        %v599 = vsel %vm598, %v550, %v597
        %vm600 = vcmp.eq.f32.partialorder %v550, 0.0
        %v601 = vand.u32 %v550, 2147483648
        %v602 = vsel %vm600, %v601, %v599
        %v603 = vrsqrt.pop %v551
        %v604 = vmul.f32 %v551, %v603
        %vm605 = vcmp.eq.f32.partialorder %v551, inf
        %v606 = vsel %vm605, %v551, %v604
        %vm607 = vcmp.eq.f32.partialorder %v551, 0.0
        %v608 = vand.u32 %v551, 2147483648
        %v609 = vsel %vm607, %v608, %v606
        %v610 = vrsqrt.pop %v552
        %v611 = vmul.f32 %v552, %v610
        %vm612 = vcmp.eq.f32.partialorder %v552, inf
        %v613 = vsel %vm612, %v552, %v611
        %vm614 = vcmp.eq.f32.partialorder %v552, 0.0
        %v615 = vand.u32 %v552, 2147483648
        %v616 = vsel %vm614, %v615, %v613
        %v617 = vrsqrt.pop %v553
        %v618 = vmul.f32 %v553, %v617
        %vm619 = vcmp.eq.f32.partialorder %v553, inf
        %v620 = vsel %vm619, %v553, %v618
        %vm621 = vcmp.eq.f32.partialorder %v553, 0.0
        %v622 = vand.u32 %v553, 2147483648
        %v623 = vsel %vm621, %v622, %v620
        %v624 = vrsqrt.pop %v554
        %v625 = vmul.f32 %v554, %v624
        %vm626 = vcmp.eq.f32.partialorder %v554, inf
        %v627 = vsel %vm626, %v554, %v625
        %vm628 = vcmp.eq.f32.partialorder %v554, 0.0
        %v629 = vand.u32 %v554, 2147483648
        %v630 = vsel %vm628, %v629, %v627
        %v631 = vrsqrt.pop %v555
        %v632 = vmul.f32 %v555, %v631
        %vm633 = vcmp.eq.f32.partialorder %v555, inf
        %v634 = vsel %vm633, %v555, %v632
        %vm635 = vcmp.eq.f32.partialorder %v555, 0.0
        %v636 = vand.u32 %v555, 2147483648
        %v637 = vsel %vm635, %v636, %v634
        %v638 = vrsqrt.pop %v556
        %v639 = vmul.f32 %v556, %v638
        %vm640 = vcmp.eq.f32.partialorder %v556, inf
        %v641 = vsel %vm640, %v556, %v639
        %vm642 = vcmp.eq.f32.partialorder %v556, 0.0
        %v643 = vand.u32 %v556, 2147483648
        %v644 = vsel %vm642, %v643, %v641
        %v645 = vrsqrt.pop %v557
        %v646 = vmul.f32 %v557, %v645
        %vm647 = vcmp.eq.f32.partialorder %v557, inf
        %v648 = vsel %vm647, %v557, %v646
        %vm649 = vcmp.eq.f32.partialorder %v557, 0.0
        %v650 = vand.u32 %v557, 2147483648
        %v651 = vsel %vm649, %v650, %v648
        %v652 = vrsqrt.pop %v558
        %v653 = vmul.f32 %v558, %v652
        %vm654 = vcmp.eq.f32.partialorder %v558, inf
        %v655 = vsel %vm654, %v558, %v653
        %vm656 = vcmp.eq.f32.partialorder %v558, 0.0
        %v657 = vand.u32 %v558, 2147483648
        %v658 = vsel %vm656, %v657, %v655
        %v659 = vrsqrt.pop %v559
        %v660 = vmul.f32 %v559, %v659
        %vm661 = vcmp.eq.f32.partialorder %v559, inf
        %v662 = vsel %vm661, %v559, %v660
        %vm663 = vcmp.eq.f32.partialorder %v559, 0.0
        %v664 = vand.u32 %v559, 2147483648
        %v665 = vsel %vm663, %v664, %v662
        %v666 = vrsqrt.pop %v560
        %v667 = vmul.f32 %v560, %v666
        %vm668 = vcmp.eq.f32.partialorder %v560, inf
        %v669 = vsel %vm668, %v560, %v667
        %vm670 = vcmp.eq.f32.partialorder %v560, 0.0
        %v671 = vand.u32 %v560, 2147483648
        %v672 = vsel %vm670, %v671, %v669
        %689 = vrot.lane.b32.xlu0 %v227, 125
        %v690 = vpop.permute.xlu0 %689
        %691 = vrot.lane.b32.xlu0 %v228, 125
        %v692 = vpop.permute.xlu0 %691
        %693 = vrot.lane.b32.xlu0 %v229, 125
        %v694 = vpop.permute.xlu0 %693
        %695 = vrot.lane.b32.xlu0 %v230, 125
        %v696 = vpop.permute.xlu0 %695
        %697 = vrot.lane.b32.xlu0 %v231, 125
        %v698 = vpop.permute.xlu0 %697
        %699 = vrot.lane.b32.xlu0 %v232, 125
        %v700 = vpop.permute.xlu0 %699
        %701 = vrot.lane.b32.xlu0 %v233, 125
        %v702 = vpop.permute.xlu0 %701
        %703 = vrot.lane.b32.xlu0 %v234, 125
        %v704 = vpop.permute.xlu0 %703
        %705 = vrot.lane.b32.xlu0 %v235, 125
        %v706 = vpop.permute.xlu0 %705
        %707 = vrot.lane.b32.xlu0 %v236, 125
        %v708 = vpop.permute.xlu0 %707
        %709 = vrot.lane.b32.xlu0 %v237, 125
        %v710 = vpop.permute.xlu0 %709
        %711 = vrot.lane.b32.xlu0 %v238, 125
        %v712 = vpop.permute.xlu0 %711
        %713 = vrot.lane.b32.xlu0 %v239, 125
        %v714 = vpop.permute.xlu0 %713
        %715 = vrot.lane.b32.xlu0 %v240, 125
        %v716 = vpop.permute.xlu0 %715
        %717 = vrot.lane.b32.xlu0 %v241, 125
        %v718 = vpop.permute.xlu0 %717
        %719 = vrot.lane.b32.xlu0 %v242, 125
        %v720 = vpop.permute.xlu0 %719
        %v737 = vsel %vm243, %v690, 0.0
        %738 = vadd.xlane.f32.xlu0 %v737
        %v739 = vpop.xlane.xlu0 %738
        %v740 = vsel %vm243, %v692, 0.0
        %741 = vadd.xlane.f32.xlu0 %v740
        %v742 = vpop.xlane.xlu0 %741
        %v743 = vsel %vm243, %v694, 0.0
        %744 = vadd.xlane.f32.xlu0 %v743
        %v745 = vpop.xlane.xlu0 %744
        %v746 = vsel %vm243, %v696, 0.0
        %747 = vadd.xlane.f32.xlu0 %v746
        %v748 = vpop.xlane.xlu0 %747
        %v749 = vsel %vm243, %v698, 0.0
        %750 = vadd.xlane.f32.xlu0 %v749
        %v751 = vpop.xlane.xlu0 %750
        %v752 = vsel %vm243, %v700, 0.0
        %753 = vadd.xlane.f32.xlu0 %v752
        %v754 = vpop.xlane.xlu0 %753
        %v755 = vsel %vm243, %v702, 0.0
        %756 = vadd.xlane.f32.xlu0 %v755
        %v757 = vpop.xlane.xlu0 %756
        %v758 = vsel %vm243, %v704, 0.0
        %759 = vadd.xlane.f32.xlu0 %v758
        %v760 = vpop.xlane.xlu0 %759
        %v761 = vsel %vm243, %v706, 0.0
        %762 = vadd.xlane.f32.xlu0 %v761
        %v763 = vpop.xlane.xlu0 %762
        %v764 = vsel %vm243, %v708, 0.0
        %765 = vadd.xlane.f32.xlu0 %v764
        %v766 = vpop.xlane.xlu0 %765
        %v767 = vsel %vm243, %v710, 0.0
        %768 = vadd.xlane.f32.xlu0 %v767
        %v769 = vpop.xlane.xlu0 %768
        %v770 = vsel %vm243, %v712, 0.0
        %771 = vadd.xlane.f32.xlu0 %v770
        %v772 = vpop.xlane.xlu0 %771
        %v773 = vsel %vm243, %v714, 0.0
        %774 = vadd.xlane.f32.xlu0 %v773
        %v775 = vpop.xlane.xlu0 %774
        %v776 = vsel %vm243, %v716, 0.0
        %777 = vadd.xlane.f32.xlu0 %v776
        %v778 = vpop.xlane.xlu0 %777
        %v779 = vsel %vm243, %v718, 0.0
        %780 = vadd.xlane.f32.xlu0 %v779
        %v781 = vpop.xlane.xlu0 %780
        %v782 = vsel %vm243, %v720, 0.0
        %783 = vadd.xlane.f32.xlu0 %v782
        %v784 = vpop.xlane.xlu0 %783
        %v786 = vrot.slane %v292, 3
        %v788 = vsel %vm293, %v786, 0.0
        %v789 = vrot.slane %v788, 4
        %v790 = vadd.f32 %v788, %v789
        %v791 = vrot.slane %v790, 2
        %v792 = vadd.f32 %v790, %v791
        %v793 = vrot.slane %v792, 1
        %v794 = vadd.f32 %v792, %v793
        %795 = vrot.lane.b32.xlu0 %v210, 125
        %v796 = vpop.permute.xlu0 %795
        %797 = vrot.lane.b32.xlu0 %v211, 125
        %v798 = vpop.permute.xlu0 %797
        %799 = vrot.lane.b32.xlu0 %v212, 125
        %v800 = vpop.permute.xlu0 %799
        %801 = vrot.lane.b32.xlu0 %v213, 125
        %v802 = vpop.permute.xlu0 %801
        %803 = vrot.lane.b32.xlu0 %v214, 125
        %v804 = vpop.permute.xlu0 %803
        %805 = vrot.lane.b32.xlu0 %v215, 125
        %v806 = vpop.permute.xlu0 %805
        %807 = vrot.lane.b32.xlu0 %v216, 125
        %v808 = vpop.permute.xlu0 %807
        %809 = vrot.lane.b32.xlu0 %v217, 125
        %v810 = vpop.permute.xlu0 %809
        %811 = vrot.lane.b32.xlu0 %v218, 125
        %v812 = vpop.permute.xlu0 %811
        %813 = vrot.lane.b32.xlu0 %v219, 125
        %v814 = vpop.permute.xlu0 %813
        %815 = vrot.lane.b32.xlu0 %v220, 125
        %v816 = vpop.permute.xlu0 %815
        %817 = vrot.lane.b32.xlu0 %v221, 125
        %v818 = vpop.permute.xlu0 %817
        %819 = vrot.lane.b32.xlu0 %v222, 125
        %v820 = vpop.permute.xlu0 %819
        %821 = vrot.lane.b32.xlu0 %v223, 125
        %v822 = vpop.permute.xlu0 %821
        %823 = vrot.lane.b32.xlu0 %v224, 125
        %v824 = vpop.permute.xlu0 %823
        %825 = vrot.lane.b32.xlu0 %v225, 125
        %v826 = vpop.permute.xlu0 %825
        %v827 = vrot.slane %v226, 3
        %v828 = vsel %vm243, %v796, 0
        %v830 = vsel %vm243, %v798, 0
        %v832 = vsel %vm243, %v800, 0
        %v834 = vsel %vm243, %v802, 0
        %v836 = vsel %vm243, %v804, 0
        %v838 = vsel %vm243, %v806, 0
        %v840 = vsel %vm243, %v808, 0
        %v842 = vsel %vm243, %v810, 0
        %v844 = vsel %vm243, %v812, 0
        %v846 = vsel %vm243, %v814, 0
        %v848 = vsel %vm243, %v816, 0
        %v850 = vsel %vm243, %v818, 0
        %v852 = vsel %vm243, %v820, 0
        %v854 = vsel %vm243, %v822, 0
        %v856 = vsel %vm243, %v824, 0
        %v858 = vsel %vm243, %v826, 0
        %v860 = vsel %vm293, %v827, 0
        %862 = vmatprep.subr.mxu0 0.0
        %863 = vmatpush1.msra.mxu0 %v860
        %864 = vmatprep.subr.mxu0 0.0
        %865 = vmatpush1.msra.mxu0 0.0
        %866 = vmatprep.subr.mxu0 0.0
        %867 = vmatpush1.msra.mxu0 0.0
        %868 = vmatprep.subr.mxu0 0.0
        %869 = vmatpush1.msra.mxu0 0.0
        %870 = vmatprep.subr.mxu0 0.0
        %871 = vmatpush1.msra.mxu0 0.0
        %872 = vmatprep.subr.mxu0 0.0
        %873 = vmatpush1.msra.mxu0 0.0
        %874 = vmatprep.subr.mxu0 0.0
        %875 = vmatpush1.msra.mxu0 0.0
        %876 = vmatprep.subr.mxu0 0.0
        %877 = vmatpush1.msra.mxu0 0.0
        %878 = vmatprep.subr.mxu0 0.0
        %879 = vmatpush1.msra.mxu0 0.0
        %880 = vmatprep.subr.mxu0 0.0
        %881 = vmatpush1.msra.mxu0 0.0
        %882 = vmatprep.subr.mxu0 0.0
        %883 = vmatpush1.msra.mxu0 0.0
        %884 = vmatprep.subr.mxu0 0.0
        %885 = vmatpush1.msra.mxu0 0.0
        %886 = vmatprep.subr.mxu0 0.0
        %887 = vmatpush1.msra.mxu0 0.0
        %888 = vmatprep.subr.mxu0 0.0
        %889 = vmatpush1.msra.mxu0 0.0
        %890 = vmatprep.subr.mxu0 0.0
        %891 = vmatpush1.msra.mxu0 0.0
        %892 = vmatprep.subr.mxu0 0.0
        %893 = vmatpush1.msra.mxu0 0.0
        %894 = vmatprep.subr.mxu0 0.0
        %895 = vmatpush1.msra.mxu0 0.0
        %896 = vmatprep.subr.mxu0 0.0
        %897 = vmatpush1.msra.mxu0 0.0
        %898 = vmatprep.subr.mxu0 0.0
        %899 = vmatpush1.msra.mxu0 0.0
        %900 = vmatprep.subr.mxu0 0.0
        %901 = vmatpush1.msra.mxu0 0.0
        %902 = vmatprep.subr.mxu0 0.0
        %903 = vmatpush1.msra.mxu0 0.0
        %904 = vmatprep.subr.mxu0 0.0
        %905 = vmatpush1.msra.mxu0 0.0
        %906 = vmatprep.subr.mxu0 0.0
        %907 = vmatpush1.msra.mxu0 0.0
        %908 = vmatprep.subr.mxu0 0.0
        %909 = vmatpush1.msra.mxu0 0.0
        %910 = vmatprep.subr.mxu0 0.0
        %911 = vmatpush1.msra.mxu0 0.0
        %912 = vmatprep.subr.mxu0 0.0
        %913 = vmatpush1.msra.mxu0 0.0
        %914 = vmatprep.subr.mxu0 0.0
        %915 = vmatpush1.msra.mxu0 0.0
        %916 = vmatprep.subr.mxu0 0.0
        %917 = vmatpush1.msra.mxu0 0.0
        %918 = vmatprep.subr.mxu0 0.0
        %919 = vmatpush1.msra.mxu0 0.0
        %920 = vmatprep.subr.mxu0 0.0
        %921 = vmatpush1.msra.mxu0 0.0
        %922 = vmatprep.subr.mxu0 0.0
        %923 = vmatpush1.msra.mxu0 0.0
        %924 = vmatprep.subr.mxu0 0.0
        %925 = vmatpush1.msra.mxu0 0.0
        %926 = vmatprep.mubr.f32.mxu0 0.0
        %927 = vmatmul.mubr.f32.gmra.mrb[0].mxu0 %v828
        %v928 = vpop.f32.mrb[0].mxu0
        %v929 = vadd.f32 0.0, %v928
        %v930 = vpop.f32.mrb[0].mxu0
        %931 = vmatprep.mubr.f32.mxu0 0.0
        %932 = vmatmul.mubr.f32.gmra.mrb[0].mxu0 %v830
        %v933 = vpop.f32.mrb[0].mxu0
        %v934 = vadd.f32 0.0, %v933
        %v935 = vpop.f32.mrb[0].mxu0
        %936 = vmatprep.mubr.f32.mxu0 0.0
        %937 = vmatmul.mubr.f32.gmra.mrb[0].mxu0 %v832
        %v938 = vpop.f32.mrb[0].mxu0
        %v939 = vadd.f32 0.0, %v938
        %v940 = vpop.f32.mrb[0].mxu0
        %941 = vmatprep.mubr.f32.mxu0 0.0
        %942 = vmatmul.mubr.f32.gmra.mrb[0].mxu0 %v834
        %v943 = vpop.f32.mrb[0].mxu0
        %v944 = vadd.f32 0.0, %v943
        %v945 = vpop.f32.mrb[0].mxu0
        %946 = vmatprep.mubr.f32.mxu0 0.0
        %947 = vmatmul.mubr.f32.gmra.mrb[0].mxu0 %v836
        %v948 = vpop.f32.mrb[0].mxu0
        %v949 = vadd.f32 0.0, %v948
        %v950 = vpop.f32.mrb[0].mxu0
        %951 = vmatprep.mubr.f32.mxu0 0.0
        %952 = vmatmul.mubr.f32.gmra.mrb[0].mxu0 %v838
        %v953 = vpop.f32.mrb[0].mxu0
        %v954 = vadd.f32 0.0, %v953
        %v955 = vpop.f32.mrb[0].mxu0
        %956 = vmatprep.mubr.f32.mxu0 0.0
        %957 = vmatmul.mubr.f32.gmra.mrb[0].mxu0 %v840
        %v958 = vpop.f32.mrb[0].mxu0
        %v959 = vadd.f32 0.0, %v958
        %v960 = vpop.f32.mrb[0].mxu0
        %961 = vmatprep.mubr.f32.mxu0 0.0
        %962 = vmatmul.mubr.f32.gmra.mrb[0].mxu0 %v842
        %v963 = vpop.f32.mrb[0].mxu0
        %v964 = vadd.f32 0.0, %v963
        %v965 = vpop.f32.mrb[0].mxu0
        %966 = vmatprep.mubr.f32.mxu0 0.0
        %967 = vmatmul.mubr.f32.gmra.mrb[0].mxu0 %v844
        %v968 = vpop.f32.mrb[0].mxu0
        %v969 = vadd.f32 0.0, %v968
        %v970 = vpop.f32.mrb[0].mxu0
        %971 = vmatprep.mubr.f32.mxu0 0.0
        %972 = vmatmul.mubr.f32.gmra.mrb[0].mxu0 %v846
        %v973 = vpop.f32.mrb[0].mxu0
        %v974 = vadd.f32 0.0, %v973
        %v975 = vpop.f32.mrb[0].mxu0
        %976 = vmatprep.mubr.f32.mxu0 0.0
        %977 = vmatmul.mubr.f32.gmra.mrb[0].mxu0 %v848
        %v978 = vpop.f32.mrb[0].mxu0
        %v979 = vadd.f32 0.0, %v978
        %v980 = vpop.f32.mrb[0].mxu0
        %981 = vmatprep.mubr.f32.mxu0 0.0
        %982 = vmatmul.mubr.f32.gmra.mrb[0].mxu0 %v850
        %v983 = vpop.f32.mrb[0].mxu0
        %v984 = vadd.f32 0.0, %v983
        %v985 = vpop.f32.mrb[0].mxu0
        %986 = vmatprep.mubr.f32.mxu0 0.0
        %987 = vmatmul.mubr.f32.gmra.mrb[0].mxu0 %v852
        %v988 = vpop.f32.mrb[0].mxu0
        %v989 = vadd.f32 0.0, %v988
        %v990 = vpop.f32.mrb[0].mxu0
        %991 = vmatprep.mubr.f32.mxu0 0.0
        %992 = vmatmul.mubr.f32.gmra.mrb[0].mxu0 %v854
        %v993 = vpop.f32.mrb[0].mxu0
        %v994 = vadd.f32 0.0, %v993
        %v995 = vpop.f32.mrb[0].mxu0
        %996 = vmatprep.mubr.f32.mxu0 0.0
        %997 = vmatmul.mubr.f32.gmra.mrb[0].mxu0 %v856
        %v998 = vpop.f32.mrb[0].mxu0
        %v999 = vadd.f32 0.0, %v998
        %v1000 = vpop.f32.mrb[0].mxu0
        %1001 = vmatprep.mubr.f32.mxu0 0.0
        %1002 = vmatmul.mubr.f32.gmra.mrb[0].mxu0 %v858
        %v1003 = vpop.f32.mrb[0].mxu0
        %v1004 = vadd.f32 0.0, %v1003
        %v1005 = vpop.f32.mrb[0].mxu0
        %1006 = vdwg.mxu0
        %v1007 = vadd.f32 %v739, %v794
        %v1008 = vadd.f32 %v742, %v794
        %v1009 = vadd.f32 %v745, %v794
        %v1010 = vadd.f32 %v748, %v794
        %v1011 = vadd.f32 %v751, %v794
        %v1012 = vadd.f32 %v754, %v794
        %v1013 = vadd.f32 %v757, %v794
        %v1014 = vadd.f32 %v760, %v794
        %v1015 = vadd.f32 %v763, %v794
        %v1016 = vadd.f32 %v766, %v794
        %v1017 = vadd.f32 %v769, %v794
        %v1018 = vadd.f32 %v772, %v794
        %v1019 = vadd.f32 %v775, %v794
        %v1020 = vadd.f32 %v778, %v794
        %v1021 = vadd.f32 %v781, %v794
        %v1022 = vadd.f32 %v784, %v794
        %v1023 = vmul.f32 %v929, 2.0
        %v1024 = vmul.f32 %v934, 2.0
        %v1025 = vmul.f32 %v939, 2.0
        %v1026 = vmul.f32 %v944, 2.0
        %v1027 = vmul.f32 %v949, 2.0
        %v1028 = vmul.f32 %v954, 2.0
        %v1029 = vmul.f32 %v959, 2.0
        %v1030 = vmul.f32 %v964, 2.0
        %v1031 = vmul.f32 %v969, 2.0
        %v1032 = vmul.f32 %v974, 2.0
        %v1033 = vmul.f32 %v979, 2.0
        %v1034 = vmul.f32 %v984, 2.0
        %v1035 = vmul.f32 %v989, 2.0
        %v1036 = vmul.f32 %v994, 2.0
        %v1037 = vmul.f32 %v999, 2.0
        %v1038 = vmul.f32 %v1004, 2.0
        %v1039 = vsub.f32 %v1007, %v1023
        %v1040 = vsub.f32 %v1008, %v1024
        %v1041 = vsub.f32 %v1009, %v1025
        %v1042 = vsub.f32 %v1010, %v1026
        %v1043 = vsub.f32 %v1011, %v1027
        %v1044 = vsub.f32 %v1012, %v1028
        %v1045 = vsub.f32 %v1013, %v1029
        %v1046 = vsub.f32 %v1014, %v1030
        %v1047 = vsub.f32 %v1015, %v1031
        %v1048 = vsub.f32 %v1016, %v1032
        %v1049 = vsub.f32 %v1017, %v1033
        %v1050 = vsub.f32 %v1018, %v1034
        %v1051 = vsub.f32 %v1019, %v1035
        %v1052 = vsub.f32 %v1020, %v1036
        %v1053 = vsub.f32 %v1021, %v1037
        %v1054 = vsub.f32 %v1022, %v1038
        %v1055 = vmax.f32 %v1039, 0.0
        %v1056 = vmax.f32 %v1040, 0.0
        %v1057 = vmax.f32 %v1041, 0.0
        %v1058 = vmax.f32 %v1042, 0.0
        %v1059 = vmax.f32 %v1043, 0.0
        %v1060 = vmax.f32 %v1044, 0.0
        %v1061 = vmax.f32 %v1045, 0.0
        %v1062 = vmax.f32 %v1046, 0.0
        %v1063 = vmax.f32 %v1047, 0.0
        %v1064 = vmax.f32 %v1048, 0.0
        %v1065 = vmax.f32 %v1049, 0.0
        %v1066 = vmax.f32 %v1050, 0.0
        %v1067 = vmax.f32 %v1051, 0.0
        %v1068 = vmax.f32 %v1052, 0.0
        %v1069 = vmax.f32 %v1053, 0.0
        %v1070 = vmax.f32 %v1054, 0.0
        %v1071 = vrsqrt.pop %v1055
        %v1072 = vmul.f32 %v1055, %v1071
        %vm1073 = vcmp.eq.f32.partialorder %v1055, inf
        %v1074 = vsel %vm1073, %v1055, %v1072
        %vm1075 = vcmp.eq.f32.partialorder %v1055, 0.0
        %v1076 = vand.u32 %v1055, 2147483648
        %v1077 = vsel %vm1075, %v1076, %v1074
        %v1078 = vrsqrt.pop %v1056
        %v1079 = vmul.f32 %v1056, %v1078
        %vm1080 = vcmp.eq.f32.partialorder %v1056, inf
        %v1081 = vsel %vm1080, %v1056, %v1079
        %vm1082 = vcmp.eq.f32.partialorder %v1056, 0.0
        %v1083 = vand.u32 %v1056, 2147483648
        %v1084 = vsel %vm1082, %v1083, %v1081
        %v1085 = vrsqrt.pop %v1057
        %v1086 = vmul.f32 %v1057, %v1085
        %vm1087 = vcmp.eq.f32.partialorder %v1057, inf
        %v1088 = vsel %vm1087, %v1057, %v1086
        %vm1089 = vcmp.eq.f32.partialorder %v1057, 0.0
        %v1090 = vand.u32 %v1057, 2147483648
        %v1091 = vsel %vm1089, %v1090, %v1088
        %v1092 = vrsqrt.pop %v1058
        %v1093 = vmul.f32 %v1058, %v1092
        %vm1094 = vcmp.eq.f32.partialorder %v1058, inf
        %v1095 = vsel %vm1094, %v1058, %v1093
        %vm1096 = vcmp.eq.f32.partialorder %v1058, 0.0
        %v1097 = vand.u32 %v1058, 2147483648
        %v1098 = vsel %vm1096, %v1097, %v1095
        %v1099 = vrsqrt.pop %v1059
        %v1100 = vmul.f32 %v1059, %v1099
        %vm1101 = vcmp.eq.f32.partialorder %v1059, inf
        %v1102 = vsel %vm1101, %v1059, %v1100
        %vm1103 = vcmp.eq.f32.partialorder %v1059, 0.0
        %v1104 = vand.u32 %v1059, 2147483648
        %v1105 = vsel %vm1103, %v1104, %v1102
        %v1106 = vrsqrt.pop %v1060
        %v1107 = vmul.f32 %v1060, %v1106
        %vm1108 = vcmp.eq.f32.partialorder %v1060, inf
        %v1109 = vsel %vm1108, %v1060, %v1107
        %vm1110 = vcmp.eq.f32.partialorder %v1060, 0.0
        %v1111 = vand.u32 %v1060, 2147483648
        %v1112 = vsel %vm1110, %v1111, %v1109
        %v1113 = vrsqrt.pop %v1061
        %v1114 = vmul.f32 %v1061, %v1113
        %vm1115 = vcmp.eq.f32.partialorder %v1061, inf
        %v1116 = vsel %vm1115, %v1061, %v1114
        %vm1117 = vcmp.eq.f32.partialorder %v1061, 0.0
        %v1118 = vand.u32 %v1061, 2147483648
        %v1119 = vsel %vm1117, %v1118, %v1116
        %v1120 = vrsqrt.pop %v1062
        %v1121 = vmul.f32 %v1062, %v1120
        %vm1122 = vcmp.eq.f32.partialorder %v1062, inf
        %v1123 = vsel %vm1122, %v1062, %v1121
        %vm1124 = vcmp.eq.f32.partialorder %v1062, 0.0
        %v1125 = vand.u32 %v1062, 2147483648
        %v1126 = vsel %vm1124, %v1125, %v1123
        %v1127 = vrsqrt.pop %v1063
        %v1128 = vmul.f32 %v1063, %v1127
        %vm1129 = vcmp.eq.f32.partialorder %v1063, inf
        %v1130 = vsel %vm1129, %v1063, %v1128
        %vm1131 = vcmp.eq.f32.partialorder %v1063, 0.0
        %v1132 = vand.u32 %v1063, 2147483648
        %v1133 = vsel %vm1131, %v1132, %v1130
        %v1134 = vrsqrt.pop %v1064
        %v1135 = vmul.f32 %v1064, %v1134
        %vm1136 = vcmp.eq.f32.partialorder %v1064, inf
        %v1137 = vsel %vm1136, %v1064, %v1135
        %vm1138 = vcmp.eq.f32.partialorder %v1064, 0.0
        %v1139 = vand.u32 %v1064, 2147483648
        %v1140 = vsel %vm1138, %v1139, %v1137
        %v1141 = vrsqrt.pop %v1065
        %v1142 = vmul.f32 %v1065, %v1141
        %vm1143 = vcmp.eq.f32.partialorder %v1065, inf
        %v1144 = vsel %vm1143, %v1065, %v1142
        %vm1145 = vcmp.eq.f32.partialorder %v1065, 0.0
        %v1146 = vand.u32 %v1065, 2147483648
        %v1147 = vsel %vm1145, %v1146, %v1144
        %v1148 = vrsqrt.pop %v1066
        %v1149 = vmul.f32 %v1066, %v1148
        %vm1150 = vcmp.eq.f32.partialorder %v1066, inf
        %v1151 = vsel %vm1150, %v1066, %v1149
        %vm1152 = vcmp.eq.f32.partialorder %v1066, 0.0
        %v1153 = vand.u32 %v1066, 2147483648
        %v1154 = vsel %vm1152, %v1153, %v1151
        %v1155 = vrsqrt.pop %v1067
        %v1156 = vmul.f32 %v1067, %v1155
        %vm1157 = vcmp.eq.f32.partialorder %v1067, inf
        %v1158 = vsel %vm1157, %v1067, %v1156
        %vm1159 = vcmp.eq.f32.partialorder %v1067, 0.0
        %v1160 = vand.u32 %v1067, 2147483648
        %v1161 = vsel %vm1159, %v1160, %v1158
        %v1162 = vrsqrt.pop %v1068
        %v1163 = vmul.f32 %v1068, %v1162
        %vm1164 = vcmp.eq.f32.partialorder %v1068, inf
        %v1165 = vsel %vm1164, %v1068, %v1163
        %vm1166 = vcmp.eq.f32.partialorder %v1068, 0.0
        %v1167 = vand.u32 %v1068, 2147483648
        %v1168 = vsel %vm1166, %v1167, %v1165
        %v1169 = vrsqrt.pop %v1069
        %v1170 = vmul.f32 %v1069, %v1169
        %vm1171 = vcmp.eq.f32.partialorder %v1069, inf
        %v1172 = vsel %vm1171, %v1069, %v1170
        %vm1173 = vcmp.eq.f32.partialorder %v1069, 0.0
        %v1174 = vand.u32 %v1069, 2147483648
        %v1175 = vsel %vm1173, %v1174, %v1172
        %v1176 = vrsqrt.pop %v1070
        %v1177 = vmul.f32 %v1070, %v1176
        %vm1178 = vcmp.eq.f32.partialorder %v1070, inf
        %v1179 = vsel %vm1178, %v1070, %v1177
        %vm1180 = vcmp.eq.f32.partialorder %v1070, 0.0
        %v1181 = vand.u32 %v1070, 2147483648
        %v1182 = vsel %vm1180, %v1181, %v1179
        %v1183 = vsub.f32 %v567, %v1077
        %v1184 = vsub.f32 %v574, %v1084
        %v1185 = vsub.f32 %v581, %v1091
        %v1186 = vsub.f32 %v588, %v1098
        %v1187 = vsub.f32 %v595, %v1105
        %v1188 = vsub.f32 %v602, %v1112
        %v1189 = vsub.f32 %v609, %v1119
        %v1190 = vsub.f32 %v616, %v1126
        %v1191 = vsub.f32 %v623, %v1133
        %v1192 = vsub.f32 %v630, %v1140
        %v1193 = vsub.f32 %v637, %v1147
        %v1194 = vsub.f32 %v644, %v1154
        %v1195 = vsub.f32 %v651, %v1161
        %v1196 = vsub.f32 %v658, %v1168
        %v1197 = vsub.f32 %v665, %v1175
        %v1198 = vsub.f32 %v672, %v1182
        %v1199 = vmul.f32 %v1183, %v1183
        %v1200 = vmul.f32 %v1184, %v1184
        %v1201 = vmul.f32 %v1185, %v1185
        %v1202 = vmul.f32 %v1186, %v1186
        %v1203 = vmul.f32 %v1187, %v1187
        %v1204 = vmul.f32 %v1188, %v1188
        %v1205 = vmul.f32 %v1189, %v1189
        %v1206 = vmul.f32 %v1190, %v1190
        %v1207 = vmul.f32 %v1191, %v1191
        %v1208 = vmul.f32 %v1192, %v1192
        %v1209 = vmul.f32 %v1193, %v1193
        %v1210 = vmul.f32 %v1194, %v1194
        %v1211 = vmul.f32 %v1195, %v1195
        %v1212 = vmul.f32 %v1196, %v1196
        %v1213 = vmul.f32 %v1197, %v1197
        %v1214 = vmul.f32 %v1198, %v1198
        %v1215 = vmul.f32 %v1199, 100.0
        %v1216 = vmul.f32 %v1200, 100.0
        %v1217 = vmul.f32 %v1201, 100.0
        %v1218 = vmul.f32 %v1202, 100.0
        %v1219 = vmul.f32 %v1203, 100.0
        %v1220 = vmul.f32 %v1204, 100.0
        %v1221 = vmul.f32 %v1205, 100.0
        %v1222 = vmul.f32 %v1206, 100.0
        %v1223 = vmul.f32 %v1207, 100.0
        %v1224 = vmul.f32 %v1208, 100.0
        %v1225 = vmul.f32 %v1209, 100.0
        %v1226 = vmul.f32 %v1210, 100.0
        %v1227 = vmul.f32 %v1211, 100.0
        %v1228 = vmul.f32 %v1212, 100.0
        %v1229 = vmul.f32 %v1213, 100.0
        %v1230 = vmul.f32 %v1214, 100.0
        %v1231 = vsub.f32 1.0, %v1215
        %v1232 = vsub.f32 1.0, %v1216
        %v1233 = vsub.f32 1.0, %v1217
        %v1234 = vsub.f32 1.0, %v1218
        %v1235 = vsub.f32 1.0, %v1219
        %v1236 = vsub.f32 1.0, %v1220
        %v1237 = vsub.f32 1.0, %v1221
        %v1238 = vsub.f32 1.0, %v1222
        %v1239 = vsub.f32 1.0, %v1223
        %v1240 = vsub.f32 1.0, %v1224
        %v1241 = vsub.f32 1.0, %v1225
        %v1242 = vsub.f32 1.0, %v1226
        %v1243 = vsub.f32 1.0, %v1227
        %v1244 = vsub.f32 1.0, %v1228
        %v1245 = vsub.f32 1.0, %v1229
        %v1246 = vsub.f32 1.0, %v1230
        %v1247 = vmax.f32 %v1231, 0.0
        %v1248 = vmax.f32 %v1232, 0.0
        %v1249 = vmax.f32 %v1233, 0.0
        %v1250 = vmax.f32 %v1234, 0.0
        %v1251 = vmax.f32 %v1235, 0.0
        %v1252 = vmax.f32 %v1236, 0.0
        %v1253 = vmax.f32 %v1237, 0.0
        %v1254 = vmax.f32 %v1238, 0.0
        %v1255 = vmax.f32 %v1239, 0.0
        %v1256 = vmax.f32 %v1240, 0.0
        %v1257 = vmax.f32 %v1241, 0.0
        %v1258 = vmax.f32 %v1242, 0.0
        %v1259 = vmax.f32 %v1243, 0.0
        %v1260 = vmax.f32 %v1244, 0.0
        %v1261 = vmax.f32 %v1245, 0.0
        %v1262 = vmax.f32 %v1246, 0.0
        %1263 = vst [vmem:[%s191] sm:$0xff] %v1247
        %1264 = vst [vmem:[%s191 + $0x8] sm:$0xff] %v1248
        %1265 = vst [vmem:[%s191 + $0x10] sm:$0xff] %v1249
        %1266 = vst [vmem:[%s191 + $0x18] sm:$0xff] %v1250
        %1267 = vst [vmem:[%s191 + $0x20] sm:$0xff] %v1251
        %1268 = vst [vmem:[%s191 + $0x28] sm:$0xff] %v1252
        %1269 = vst [vmem:[%s191 + $0x30] sm:$0xff] %v1253
        %1270 = vst [vmem:[%s191 + $0x38] sm:$0xff] %v1254
        %1271 = vst [vmem:[%s191 + $0x40] sm:$0xff] %v1255
        %1272 = vst [vmem:[%s191 + $0x48] sm:$0xff] %v1256
        %1273 = vst [vmem:[%s191 + $0x50] sm:$0xff] %v1257
        %1274 = vst [vmem:[%s191 + $0x58] sm:$0xff] %v1258
        %1275 = vst [vmem:[%s191 + $0x60] sm:$0xff] %v1259
        %1276 = vst [vmem:[%s191 + $0x68] sm:$0xff] %v1260
        %1277 = vst [vmem:[%s191 + $0x70] sm:$0xff] %v1261
        %1278 = vst [vmem:[%s191 + $0x78] sm:$0xff] %v1262
        %s1279 = sand.u32 %s103, 1
        %s1280 = scalar_lea.sflag [#allocation3], %s1279
        %s1281 = sand.u32 %s103, 1
        %s1282 = smul.addr %s1281, 128
        %s1283 = scalar_lea.vmem [#allocation2], %s1282
        // Predicated region
        $region29: #{tpu_custom_call.1} parent=27 // pred_check
          %p1284 = pneg %p113
        $region30: #{tpu_custom_call.1} parent=27 // pred_check_branch
          %1286 = sbr.rel (%p1284) target = $region32
        $region31: #{tpu_custom_call.1} parent=27 // pred_region
          %s1287 = smul.u32 16, %s22
          %s1289 = ssub.s32 2048, 2048
          %1290 = vsyncadd %s1280, %s1289
          %s1291 = sadd.s32 %s23, %s1287
          %s1292 = smul.addr %s21, 16
          %s1293 = sadd.s32 %s1291, %s1292
          %s1294 = smul.addr %s1293, 128
          %s1295 = scalar_lea.hbm %s2, %s1294
          %s1296 = sshll.u32 %s1283, 4
          %s1297 = int_to_ptr.vmem [resolvable:$true] %s1296
          %1302 = dma.vmem_to_hbm [thread:$0]  %s1297, 2048, %s1295, %s1280, 128, 128, 8
        $region32: #{tpu_custom_call.1} parent=27 // pred_fallthru
          _
      $region28: #{tpu_custom_call.1} parent=5 // pred_fallthru
        _
      %p1303 = scmp.le.s32.totalorder 2, %s11
      // Predicated region
      $region33: #{tpu_custom_call.1} parent=5 // pred_check
        %p1304 = pneg %p1303
      $region34: #{tpu_custom_call.1} parent=5 // pred_check_branch
        %1306 = sbr.rel (%p1304) target = $region36
      $region35: #{tpu_custom_call.1} parent=5 // pred_region
        %s1307 = ssub.s32 %s11, 2
        // Predicated region
        $region37: #{tpu_custom_call.1} parent=35 // pred_check
          %p1308 = pneg %p119
        $region38: #{tpu_custom_call.1} parent=35 // pred_check_branch
          %1310 = sbr.rel (%p1308) target = $region40
        $region39: #{tpu_custom_call.1} parent=35 // pred_region
          %s1311 = sand.u32 %s104, 1
          %s1312 = scalar_lea.sflag [#allocation3], %s1311
          %s1313 = sand.u32 %s104, 1
          %s1314 = smul.addr %s1313, 128
          %s1315 = scalar_lea.vmem [#allocation2], %s1314
          %1316 = dma.done %s1312, 2048
        $region40: #{tpu_custom_call.1} parent=35 // pred_fallthru
          _
      $region36: #{tpu_custom_call.1} parent=5 // pred_fallthru
        _
    $region6: #{tpu_custom_call.1} parent=1 // loop_footer
      %s15 = sadd.s32 1, %s11
    $region7: #{tpu_custom_call.1} parent=1 // loop_footer_branch
      %10 = sbr.rel target = $region3
    $region8: #{tpu_custom_call.1} parent=1 // loop_exit
      _
    %1317 = vsyncpa [#allocation3], 1
    %s1318 = scalar_lea.sflag [#allocation3], 1
    %1319 = vsyncpa %s1318, 1

</llo_original>
